<compile_context>
chip_gen: v5e
topology: v5e:2x2
jax: 0.10.0
libtpu: 0.0.40
codegen_flags: <defaults>
</compile_context>

<pallas_src>
import functools

import jax
import jax.numpy as jnp
from jax.experimental import pallas as pl
from jax.experimental.pallas import tpu as pltpu

_LANE = 128
_SUBLANE = 8
_MAX_BLOCK_ROWS = 4096      # 4096 x 128 f32 block = 2 MiB per streamed input
_NUM_CORE_SPLITS = 2        # v7x has 2 TensorCores; extra split is ~free on v5e/v6e


def _round_up(x, m):
    return (x + m - 1) // m * m


def _elementwise(kind, d):
    if kind == "l1":
        return jnp.abs(d)
    if kind == "mse":
        return d * d
    raise ValueError(f"unsupported loss kind: {kind}")


def _vmem_capacity_bytes():
    """Physical VMEM of this TPU generation (conservative fallback: 64 MiB = v7x)."""
    try:
        info = pltpu.get_tpu_info()
        for name in ("vmem_capacity_bytes", "vmem_size_bytes", "vmem_bytes"):
            val = getattr(info, name, None)
            if val:
                return int(val)
    except Exception:
        pass
    return 64 * 1024 * 1024


def _fused_loss_kernel(*refs, metas, half_blocks, num_splits, n_tail_pairs, out_cols):
    """refs = [p0, g0, ..., p_{T-1}, g_{T-1}, tail pairs..., out, acc0, ..., acc_{T-1}]."""
    n_tasks = len(metas)
    main_refs = refs[:2 * n_tasks]
    tail_refs = refs[2 * n_tasks:2 * n_tasks + 2 * n_tail_pairs]
    out_ref = refs[2 * n_tasks + 2 * n_tail_pairs]
    acc_refs = refs[2 * n_tasks + 2 * n_tail_pairs + 1:]

    c = pl.program_id(0)                 # core-split axis ("parallel", v7x megacore)
    bi = pl.program_id(1)                # streaming/reduction axis ("arbitrary")
    g = c * half_blocks + bi             # global block index of this grid step

    @pl.when(bi == 0)
    def _():
        for acc in acc_refs:
            acc[...] = jnp.zeros_like(acc)

    for t, meta in enumerate(metas):
        p_ref, g_ref = main_refs[2 * t], main_refs[2 * t + 1]
        kind = meta["kind"]
        block_rows_t = meta["block_rows"]
        blocks_t, full_t, tail_rows_t = meta["blocks"], meta["full"], meta["tail_rows"]
        k = block_rows_t // _SUBLANE

        def _accumulate(masked, tail_rows=0):
            # Cast on load: DMA stays in the input dtype, math/accumulate in f32.
            d = p_ref[...].astype(jnp.float32) - g_ref[...].astype(jnp.float32)
            v = _elementwise(kind, d)
            if masked:
                row = jax.lax.broadcasted_iota(jnp.int32, (block_rows_t, _LANE), 0)
                # Select (not multiply): OOB rows of a partial block may hold NaN/Inf.
                v = jnp.where(row < tail_rows, v, 0.0)
            # Vreg-shaped accumulation (pure VPU); cross-lane reduce deferred.
            acc_refs[t][...] += v.reshape(k, _SUBLANE, _LANE).sum(axis=0)

        if blocks_t == num_splits * half_blocks and tail_rows_t == 0:
            # Every grid step maps to a distinct full block: no gating, no mask.
            _accumulate(masked=False)
        else:
            if full_t > 0:
                @pl.when(g < full_t)                  # steady-state: unmasked
                def _():
                    _accumulate(masked=False)
            if tail_rows_t > 0:
                @pl.when(g == blocks_t - 1)           # single partial block: masked
                def _():
                    _accumulate(masked=True, tail_rows=tail_rows_t)
            # Clamped steps (g >= blocks_t) skip compute entirely.

        if meta["tail_pair"] is not None:
            # <128-element ragged tail, zero-padded slab: zero pairs contribute 0.
            tp_ref = tail_refs[2 * meta["tail_pair"]]
            tg_ref = tail_refs[2 * meta["tail_pair"] + 1]

            @pl.when(jnp.logical_and(c == 0, bi == 0))
            def _():
                dt = tp_ref[...].astype(jnp.float32) - tg_ref[...].astype(jnp.float32)
                acc_refs[t][...] += _elementwise(kind, dt)

    @pl.when(bi == half_blocks - 1)
    def _():
        # One lane-dense (1, out_cols) row per half: lane index = task id.
        lane = jax.lax.broadcasted_iota(jnp.int32, (1, out_cols), 1)
        total = jnp.zeros((1, out_cols), jnp.float32)
        for t in range(n_tasks):
            s = jnp.sum(acc_refs[t][...], keepdims=True)   # (1, 1) partial sum
            total = total + jnp.where(lane == t, s, 0.0)
        out_ref[...] = total


def multi_task_mean_loss(task_inputs):
    """task_inputs: sequence of (pred, gt, kind), kind in {'l1', 'mse'}.

    Computes every task's mean-reduction loss in ONE fused pallas_call and
    returns a list of scalar losses (one per task)."""
    n_tasks = len(task_inputs)
    assert 1 <= n_tasks <= _LANE

    main_inputs, tail_inputs, metas = [], [], []
    max_rows, max_itemsize = 0, 1
    for pred, gt, kind in task_inputs:
        pred = jnp.asarray(pred)
        gt = jnp.asarray(gt)
        assert pred.shape == gt.shape
        n = pred.size
        assert n > 0
        flat_p = pred.reshape(-1)
        flat_g = gt.reshape(-1)
        aligned = (n // _LANE) * _LANE
        tail_pair = None
        if aligned != n:
            # Ragged lane tail: stream only the aligned prefix and fold the
            # <128-element remainder into a tiny resident zero-padded slab.
            n_tail = n - aligned
            pad = _SUBLANE * _LANE - n_tail
            tail_pair = len(tail_inputs) // 2
            tail_inputs.append(
                jnp.pad(flat_p[aligned:], (0, pad)).reshape(_SUBLANE, _LANE))
            tail_inputs.append(
                jnp.pad(flat_g[aligned:], (0, pad)).reshape(_SUBLANE, _LANE))
        if aligned == 0:
            # Whole tensor lives in the tail slab; keep a zero main slab so the
            # kernel's ref layout stays uniform (contributes exactly 0).
            slab_p = jnp.zeros((_SUBLANE, _LANE), jnp.float32)
            slab_g = jnp.zeros((_SUBLANE, _LANE), jnp.float32)
        else:
            slab_p = flat_p[:aligned].reshape(-1, _LANE)
            slab_g = flat_g[:aligned].reshape(-1, _LANE)
        rows = slab_p.shape[0]
        main_inputs += [slab_p, slab_g]
        metas.append({"kind": kind, "rows": rows, "inv_n": 1.0 / float(n),
                      "tail_pair": tail_pair})
        max_rows = max(max_rows, rows)
        max_itemsize = max(max_itemsize, slab_p.dtype.itemsize, slab_g.dtype.itemsize)

    # Block sizing: biggest lane-dense block whose double-buffered streamed
    # inputs fit a generation-aware VMEM budget.
    vmem_cap = _vmem_capacity_bytes()
    input_budget = min(32 * 1024 * 1024, vmem_cap // 4)
    per_row_bytes = 2 * (2 * n_tasks) * _LANE * max_itemsize   # 2 pipeline buffers
    cap_rows = max(_SUBLANE, (input_budget // per_row_bytes) // _SUBLANE * _SUBLANE)
    block_rows = max(_SUBLANE,
                     min(_MAX_BLOCK_ROWS, cap_rows, _round_up(max_rows, _SUBLANE)))

    for m in metas:
        br = min(block_rows, _round_up(m["rows"], _SUBLANE))
        m["block_rows"] = br
        m["blocks"] = int(pl.cdiv(m["rows"], br))
        m["full"] = m["rows"] // br
        m["tail_rows"] = m["rows"] - m["full"] * br

    max_blocks = max(m["blocks"] for m in metas)
    num_splits = _NUM_CORE_SPLITS if max_blocks >= _NUM_CORE_SPLITS else 1
    half_blocks = int(pl.cdiv(max_blocks, num_splits))

    def _make_index_map(blocks_t):
        last = blocks_t - 1
        # Clamp so tasks with fewer blocks than the grid never index past their
        # slab; the repeated (unchanged) block index is not re-fetched.
        return lambda c, bi: (jnp.minimum(c * half_blocks + bi, last), 0)

    in_specs = []
    for m in metas:
        spec = pl.BlockSpec((m["block_rows"], _LANE), _make_index_map(m["blocks"]))
        in_specs += [spec, spec]
    in_specs += [pl.BlockSpec((_SUBLANE, _LANE), lambda c, bi: (0, 0))] * len(tail_inputs)

    out_cols = _round_up(n_tasks, _LANE)
    out_shape = jax.ShapeDtypeStruct((num_splits, out_cols), jnp.float32)
    out_specs = pl.BlockSpec((1, out_cols), lambda c, bi: (c, 0))
    scratch_shapes = [pltpu.VMEM((_SUBLANE, _LANE), jnp.float32) for _ in range(n_tasks)]

    # Streamed inputs (double-buffered) + generous headroom for elementwise
    # temporaries, resident tails, outputs and compiler-internal scratch.
    vmem_limit = int(max(16 << 20,
                         min(per_row_bytes * block_rows + (16 << 20),
                             vmem_cap * 3 // 4)))

    kernel = functools.partial(
        _fused_loss_kernel, metas=metas, half_blocks=half_blocks,
        num_splits=num_splits, n_tail_pairs=len(tail_inputs) // 2, out_cols=out_cols)

    out = pl.pallas_call(
        kernel,
        out_shape=out_shape,
        grid_spec=pltpu.PrefetchScalarGridSpec(
            num_scalar_prefetch=0,
            grid=(num_splits, half_blocks),
            in_specs=in_specs,
            out_specs=out_specs,
            scratch_shapes=scratch_shapes,
        ),
        compiler_params=pltpu.CompilerParams(
            dimension_semantics=("parallel", "arbitrary"),
            vmem_limit_bytes=vmem_limit),
    )(*main_inputs, *tail_inputs)

    partial_sums = jnp.sum(out, axis=0)          # combine the core-split halves
    inv_n = jnp.asarray([m["inv_n"] for m in metas], dtype=jnp.float32)
    vals = partial_sums[:n_tasks] * inv_n
    return [vals[t] for t in range(n_tasks)]


class L1Loss:
    """Mean |pred - gt| (PyTorch nn.L1Loss default reduction)."""
    kind = "l1"

    def __call__(self, pred, gt):
        return multi_task_mean_loss([(pred, gt, self.kind)])[0]


class MSELoss:
    """Mean (pred - gt)^2 (PyTorch nn.MSELoss default reduction)."""
    kind = "mse"

    def __call__(self, pred, gt):
        return multi_task_mean_loss([(pred, gt, self.kind)])[0]


class SingleTaskLoss:
    """JAX/Pallas port of the PyTorch SingleTaskLoss wrapper.

    Dict plumbing is identical to the reference module.  When every per-task
    loss is a supported kind, all tasks are fused into a single pallas_call so
    launch / pipeline-prologue overhead is paid once."""

    def __init__(self, tasks, losses):
        self.tasks = tasks
        self.losses = losses

    def __call__(self, pred, gt):
        preds = {}
        preds['initial'] = pred
        preds['final'] = pred

        kinds = [getattr(self.losses[t], "kind", None) for t in self.tasks]
        if self.tasks and all(k in ("l1", "mse") for k in kinds):
            vals = multi_task_mean_loss(
                [(pred[t], gt[t], k) for t, k in zip(self.tasks, kinds)])
            initial = {t: v for t, v in zip(self.tasks, vals)}
        else:
            # TODO(synk): unrecognized user loss callables fall back to per-task calls.
            initial = {t: self.losses[t](pred[t], gt[t]) for t in self.tasks}

        losses = {}
        losses['initial'] = initial
        losses['final'] = losses['initial']
        return (losses, preds)


if __name__ == "__main__":
    key = jax.random.PRNGKey(0)
    k1, k2, k3, k4 = jax.random.split(key, 4)

    # Two synthetic dense-prediction tasks, NCHW tensors (B=2, C=4, H=16, W=16).
    tasks = ["depth", "normals"]
    losses = {"depth": L1Loss(), "normals": MSELoss()}

    pred = {
        "depth": jax.random.normal(k1, (2, 4, 16, 16), dtype=jnp.float32),
        "normals": jax.random.normal(k2, (2, 4, 16, 16), dtype=jnp.float32),
    }
    gt = {
        "depth": jax.random.normal(k3, (2, 4, 16, 16), dtype=jnp.float32),
        "normals": jax.random.normal(k4, (2, 4, 16, 16), dtype=jnp.float32),
    }

    module = SingleTaskLoss(tasks, losses)
    out_losses, out_preds = module(pred, gt)
    jax.block_until_ready(out_losses)

    # Correctness check against pure-JAX reference.
    ref_l1 = jnp.mean(jnp.abs(pred["depth"] - gt["depth"]))
    ref_mse = jnp.mean((pred["normals"] - gt["normals"]) ** 2)
    assert jnp.allclose(out_losses["initial"]["depth"], ref_l1, rtol=1e-5, atol=1e-5)
    assert jnp.allclose(out_losses["initial"]["normals"], ref_mse, rtol=1e-5, atol=1e-5)
    assert jnp.allclose(out_losses["final"]["depth"], out_losses["initial"]["depth"])

    # Ragged inputs exercise the masked partial block + zero-padded tail paths.
    rp = jax.random.normal(k1, (3, 5, 7), dtype=jnp.float32)      # 105 elems (<128)
    rg = jax.random.normal(k2, (3, 5, 7), dtype=jnp.float32)
    ragged = multi_task_mean_loss([(rp, rg, "l1")])[0]
    assert jnp.allclose(ragged, jnp.mean(jnp.abs(rp - rg)), rtol=1e-5, atol=1e-5)

    mp = jax.random.normal(k3, (5, 37, 32), dtype=jnp.float32)    # 5920 = 46*128 + 32
    mg = jax.random.normal(k4, (5, 37, 32), dtype=jnp.float32)
    mixed = multi_task_mean_loss([(mp, mg, "mse")])[0]
    assert jnp.allclose(mixed, jnp.mean((mp - mg) ** 2), rtol=1e-5, atol=1e-5)

    # Standalone (unfused) loss callables agree with the fused path.
    assert jnp.allclose(losses["depth"](pred["depth"], gt["depth"]), ref_l1,
                        rtol=1e-5, atol=1e-5)

    print("KERNEL_OK")
</pallas_src>

<mosaic_0001>
module attributes {stable_mosaic.version = 11 : i64} {
  func.func @_fused_loss_kernel(%arg0: i32, %arg1: i32, %arg2: memref<16x128xf32, #tpu.memory_space<vmem>>, %arg3: memref<16x128xf32, #tpu.memory_space<vmem>>, %arg4: memref<16x128xf32, #tpu.memory_space<vmem>>, %arg5: memref<16x128xf32, #tpu.memory_space<vmem>>, %arg6: memref<1x128xf32, #tpu.memory_space<vmem>>, %arg7: memref<8x128xf32, #tpu.memory_space<vmem>>, %arg8: memref<8x128xf32, #tpu.memory_space<vmem>>) attributes {dimension_semantics = [#tpu.dimension_semantics<parallel>, #tpu.dimension_semantics<arbitrary>], iteration_bounds = array<i64: 1, 1>, scalar_prefetch = 0 : i64, scratch_operands = 2 : i64, tpu.core_type = #tpu.core_type<tc>, window_params = [{transform_indices = @transform_0, window_bounds = array<i64: 16, 128>}, {transform_indices = @transform_1, window_bounds = array<i64: 16, 128>}, {transform_indices = @transform_2, window_bounds = array<i64: 16, 128>}, {transform_indices = @transform_3, window_bounds = array<i64: 16, 128>}, {transform_indices = @transform_4, window_bounds = array<i64: 1, 128>}]} {
    %c0_i32 = arith.constant 0 : i32
    %0 = arith.cmpi eq, %arg1, %c0_i32 : i32
    %1 = arith.extui %0 : i1 to i32
    %c0_i32_0 = arith.constant 0 : i32
    %2 = arith.cmpi ne, %1, %c0_i32_0 : i32
    scf.if %2 {
      %cst_19 = arith.constant 0.000000e+00 : f32
      %24 = vector.broadcast %cst_19 : f32 to vector<8x128xf32>
      %c0_20 = arith.constant 0 : index
      %c0_21 = arith.constant 0 : index
      %25 = vector.load %arg7[%c0_20, %c0_21] : memref<8x128xf32, #tpu.memory_space<vmem>>, vector<8x128xf32>
      tpu.vector_store %arg7[%c0_20, %c0_21], %24 {strides = array<i32>} : memref<8x128xf32, #tpu.memory_space<vmem>>, vector<8x128xf32>,
      %cst_22 = arith.constant 0.000000e+00 : f32
      %26 = vector.broadcast %cst_22 : f32 to vector<8x128xf32>
      %c0_23 = arith.constant 0 : index
      %c0_24 = arith.constant 0 : index
      %27 = vector.load %arg8[%c0_23, %c0_24] : memref<8x128xf32, #tpu.memory_space<vmem>>, vector<8x128xf32>
      tpu.vector_store %arg8[%c0_23, %c0_24], %26 {strides = array<i32>} : memref<8x128xf32, #tpu.memory_space<vmem>>, vector<8x128xf32>,
    } else {
    }
    %c0 = arith.constant 0 : index
    %c0_1 = arith.constant 0 : index
    %3 = vector.load %arg2[%c0, %c0_1] : memref<16x128xf32, #tpu.memory_space<vmem>>, vector<16x128xf32>
    %c0_2 = arith.constant 0 : index
    %c0_3 = arith.constant 0 : index
    %4 = vector.load %arg3[%c0_2, %c0_3] : memref<16x128xf32, #tpu.memory_space<vmem>>, vector<16x128xf32>
    %5 = arith.subf %3, %4 : vector<16x128xf32>
    %6 = math.absf %5 : vector<16x128xf32>
    %c0_4 = arith.constant 0 : index
    %c0_5 = arith.constant 0 : index
    %7 = vector.load %arg7[%c0_4, %c0_5] : memref<8x128xf32, #tpu.memory_space<vmem>>, vector<8x128xf32>
    %8 = vector.shape_cast %6 : vector<16x128xf32> to vector<2x8x128xf32>
    %cst = arith.constant dense<0.000000e+00> : vector<8x128xf32>
    %9 = vector.multi_reduction <add>, %8, %cst [0] : vector<2x8x128xf32> to vector<8x128xf32>
    %10 = arith.addf %7, %9 : vector<8x128xf32>
    %c0_6 = arith.constant 0 : index
    %c0_7 = arith.constant 0 : index
    %11 = vector.load %arg7[%c0_6, %c0_7] : memref<8x128xf32, #tpu.memory_space<vmem>>, vector<8x128xf32>
    tpu.vector_store %arg7[%c0_6, %c0_7], %10 {strides = array<i32>} : memref<8x128xf32, #tpu.memory_space<vmem>>, vector<8x128xf32>,
    %c0_8 = arith.constant 0 : index
    %c0_9 = arith.constant 0 : index
    %12 = vector.load %arg4[%c0_8, %c0_9] : memref<16x128xf32, #tpu.memory_space<vmem>>, vector<16x128xf32>
    %c0_10 = arith.constant 0 : index
    %c0_11 = arith.constant 0 : index
    %13 = vector.load %arg5[%c0_10, %c0_11] : memref<16x128xf32, #tpu.memory_space<vmem>>, vector<16x128xf32>
    %14 = arith.subf %12, %13 : vector<16x128xf32>
    %15 = arith.mulf %14, %14 : vector<16x128xf32>
    %c0_12 = arith.constant 0 : index
    %c0_13 = arith.constant 0 : index
    %16 = vector.load %arg8[%c0_12, %c0_13] : memref<8x128xf32, #tpu.memory_space<vmem>>, vector<8x128xf32>
    %17 = vector.shape_cast %15 : vector<16x128xf32> to vector<2x8x128xf32>
    %cst_14 = arith.constant dense<0.000000e+00> : vector<8x128xf32>
    %18 = vector.multi_reduction <add>, %17, %cst_14 [0] : vector<2x8x128xf32> to vector<8x128xf32>
    %19 = arith.addf %16, %18 : vector<8x128xf32>
    %c0_15 = arith.constant 0 : index
    %c0_16 = arith.constant 0 : index
    %20 = vector.load %arg8[%c0_15, %c0_16] : memref<8x128xf32, #tpu.memory_space<vmem>>, vector<8x128xf32>
    tpu.vector_store %arg8[%c0_15, %c0_16], %19 {strides = array<i32>} : memref<8x128xf32, #tpu.memory_space<vmem>>, vector<8x128xf32>,
    %c0_i32_17 = arith.constant 0 : i32
    %21 = arith.cmpi eq, %arg1, %c0_i32_17 : i32
    %22 = arith.extui %21 : i1 to i32
    %c0_i32_18 = arith.constant 0 : i32
    %23 = arith.cmpi ne, %22, %c0_i32_18 : i32
    scf.if %23 {
      %24 = tpu.iota {dimensions = array<i32: 1>} : vector<1x128xi32>
      %cst_19 = arith.constant 0.000000e+00 : f32
      %25 = vector.broadcast %cst_19 : f32 to vector<1x128xf32>
      %c0_20 = arith.constant 0 : index
      %c0_21 = arith.constant 0 : index
      %26 = vector.load %arg7[%c0_20, %c0_21] : memref<8x128xf32, #tpu.memory_space<vmem>>, vector<8x128xf32>
      %27 = vector.shape_cast %26 : vector<8x128xf32> to vector<1x8x128xf32>
      %cst_22 = arith.constant dense<0.000000e+00> : vector<1xf32>
      %28 = vector.multi_reduction <add>, %27, %cst_22 [1, 2] : vector<1x8x128xf32> to vector<1xf32>
      %29 = vector.shape_cast %28 : vector<1xf32> to vector<1x1x1xf32>
      %30 = vector.extract %29[0, 0, 0] : f32 from vector<1x1x1xf32>
      %31 = vector.broadcast %30 : f32 to vector<1x1xf32>
      %c0_i32_23 = arith.constant 0 : i32
      %32 = vector.broadcast %c0_i32_23 : i32 to vector<1x128xi32>
      %33 = arith.cmpi eq, %24, %32 : vector<1x128xi32>
      %cst_24 = arith.constant 0.000000e+00 : f32
      %34 = vector.shape_cast %31 : vector<1x1xf32> to vector<1x1xf32>
      %35 = vector.broadcast %34 : vector<1x1xf32> to vector<1x128xf32>
      %36 = vector.broadcast %cst_24 : f32 to vector<1x128xf32>
      %37 = arith.select %33, %35, %36 : vector<1x128xi1>, vector<1x128xf32>
      %38 = arith.addf %25, %37 : vector<1x128xf32>
      %c0_25 = arith.constant 0 : index
      %c0_26 = arith.constant 0 : index
      %39 = vector.load %arg8[%c0_25, %c0_26] : memref<8x128xf32, #tpu.memory_space<vmem>>, vector<8x128xf32>
      %40 = vector.shape_cast %39 : vector<8x128xf32> to vector<1x8x128xf32>
      %cst_27 = arith.constant dense<0.000000e+00> : vector<1xf32>
      %41 = vector.multi_reduction <add>, %40, %cst_27 [1, 2] : vector<1x8x128xf32> to vector<1xf32>
      %42 = vector.shape_cast %41 : vector<1xf32> to vector<1x1x1xf32>
      %43 = vector.extract %42[0, 0, 0] : f32 from vector<1x1x1xf32>
      %44 = vector.broadcast %43 : f32 to vector<1x1xf32>
      %c1_i32 = arith.constant 1 : i32
      %45 = vector.broadcast %c1_i32 : i32 to vector<1x128xi32>
      %46 = arith.cmpi eq, %24, %45 : vector<1x128xi32>
      %cst_28 = arith.constant 0.000000e+00 : f32
      %47 = vector.shape_cast %44 : vector<1x1xf32> to vector<1x1xf32>
      %48 = vector.broadcast %47 : vector<1x1xf32> to vector<1x128xf32>
      %49 = vector.broadcast %cst_28 : f32 to vector<1x128xf32>
      %50 = arith.select %46, %48, %49 : vector<1x128xi1>, vector<1x128xf32>
      %51 = arith.addf %38, %50 : vector<1x128xf32>
      %c0_29 = arith.constant 0 : index
      %c0_30 = arith.constant 0 : index
      %52 = vector.load %arg6[%c0_29, %c0_30] : memref<1x128xf32, #tpu.memory_space<vmem>>, vector<1x128xf32>
      tpu.vector_store %arg6[%c0_29, %c0_30], %51 {strides = array<i32>} : memref<1x128xf32, #tpu.memory_space<vmem>>, vector<1x128xf32>,
    } else {
    }
    return
  }
  func.func @transform_0(%arg0: i32, %arg1: i32) -> (i32, i32) {
    %c1_i32 = arith.constant 1 : i32
    %0 = arith.muli %arg0, %c1_i32 : i32
    %1 = arith.addi %0, %arg1 : i32
    %c0_i32 = arith.constant 0 : i32
    %2 = arith.minsi %1, %c0_i32 : i32
    %c0_i32_0 = arith.constant 0 : i32
    %c0_i32_1 = arith.constant 0 : i32
    return %2, %c0_i32_0 : i32, i32
  }
  func.func @transform_1(%arg0: i32, %arg1: i32) -> (i32, i32) {
    %c1_i32 = arith.constant 1 : i32
    %0 = arith.muli %arg0, %c1_i32 : i32
    %1 = arith.addi %0, %arg1 : i32
    %c0_i32 = arith.constant 0 : i32
    %2 = arith.minsi %1, %c0_i32 : i32
    %c0_i32_0 = arith.constant 0 : i32
    %c0_i32_1 = arith.constant 0 : i32
    return %2, %c0_i32_0 : i32, i32
  }
  func.func @transform_2(%arg0: i32, %arg1: i32) -> (i32, i32) {
    %c1_i32 = arith.constant 1 : i32
    %0 = arith.muli %arg0, %c1_i32 : i32
    %1 = arith.addi %0, %arg1 : i32
    %c0_i32 = arith.constant 0 : i32
    %2 = arith.minsi %1, %c0_i32 : i32
    %c0_i32_0 = arith.constant 0 : i32
    %c0_i32_1 = arith.constant 0 : i32
    return %2, %c0_i32_0 : i32, i32
  }
  func.func @transform_3(%arg0: i32, %arg1: i32) -> (i32, i32) {
    %c1_i32 = arith.constant 1 : i32
    %0 = arith.muli %arg0, %c1_i32 : i32
    %1 = arith.addi %0, %arg1 : i32
    %c0_i32 = arith.constant 0 : i32
    %2 = arith.minsi %1, %c0_i32 : i32
    %c0_i32_0 = arith.constant 0 : i32
    %c0_i32_1 = arith.constant 0 : i32
    return %2, %c0_i32_0 : i32, i32
  }
  func.func @transform_4(%arg0: i32, %arg1: i32) -> (i32, i32) {
    %c0_i32 = arith.constant 0 : i32
    %c0_i32_0 = arith.constant 0 : i32
    return %arg0, %c0_i32 : i32, i32
  }
}

</mosaic_0001>

<llo_original>
// kernel: tpu_custom_call.1
$region0: #{tpu_custom_call.1}
  #allocation0 [shape = 'u32[]', space=smem, size = 0x4, offset = 0x4, fixed_abs, tag = 'smem constant byte address 0x4 - core index']
  #allocation1 [shape = 'u32[72,128]{1,0:T(1,128)}', space=vmem, size = 0x9000, scoped, tag = 'internal scratch']
  #allocation2 [shape = 'f32[8,128]{1,0:T(8,128)}', space=vmem, size = 0x1000, scoped, tag = 'scratch operand']
  #allocation3 [shape = 'f32[8,128]{1,0:T(8,128)}', space=vmem, size = 0x1000, scoped, tag = 'scratch operand']
  %s0 = inlined_call_operand.hbm [shape: f32[16,128], index: 0, kind: input, shape index: {}]
  %s1 = inlined_call_operand.hbm [shape: f32[16,128], index: 1, kind: input, shape index: {}]
  %s2 = inlined_call_operand.hbm [shape: f32[16,128], index: 2, kind: input, shape index: {}]
  %s3 = inlined_call_operand.hbm [shape: f32[16,128], index: 3, kind: input, shape index: {}]
  %s4 = inlined_call_operand.hbm [shape: f32[1,128], index: 4, kind: output, shape index: {}]
  %s5 = sld [smem:[#allocation0]]
  $region50: #{tpu_custom_call.1} parent=0
    _
  %s7 = ssub.s32 1, %s5
  %s8 = scalar_select 0, %s7, %s5
  $region1: #{tpu_custom_call.1} parent=0
    #allocation4 [shape = 'u8[8192]{0}', space=vmem, size = 0x2000, scoped, tag = 'input window, operand 0, single buffered']
    #allocation5 [shape = 's32[1]{0}', space=sflag, size = 0x4, scoped, tag = 'scoped memory for tpu_custom_call.1']
    #allocation6 [shape = 's32[1]{0}', space=sflag, size = 0x4, scoped, tag = 'scoped memory for tpu_custom_call.1']
    #allocation7 [shape = 'u8[8192]{0}', space=vmem, size = 0x2000, scoped, tag = 'input window, operand 1, single buffered']
    #allocation8 [shape = 's32[1]{0}', space=sflag, size = 0x4, scoped, tag = 'scoped memory for tpu_custom_call.1']
    #allocation9 [shape = 'u8[8192]{0}', space=vmem, size = 0x2000, scoped, tag = 'input window, operand 2, single buffered']
    #allocation10 [shape = 'u8[8192]{0}', space=vmem, size = 0x2000, scoped, tag = 'input window, operand 3, single buffered']
    #allocation11 [shape = 's32[1]{0}', space=sflag, size = 0x4, scoped, tag = 'scoped memory for tpu_custom_call.1']
    #allocation12 [shape = 'u8[512]{0}', space=vmem, size = 0x400, scoped, tag = 'output window, operand 0, single buffered']
    %9 = vsyncpa [#allocation5], 0
    %10 = vsyncpa [#allocation8], 0
    %11 = vsyncpa [#allocation11], 0
    %12 = vsyncpa [#allocation6], 0
    // Predicated region
    $region2: #{tpu_custom_call.1} parent=1 // pred_check
      _
    $region3: #{tpu_custom_call.1} parent=1 // pred_check_branch
      %14 = sbr.rel (0) target = $region5
    $region4: #{tpu_custom_call.1} parent=1 // pred_region
      %s15 = sadd.s32 0, 0
      %p16 = scmp.lt.s32.totalorder %s15, 0
      %s17 = scalar_select %p16, %s15, 0
      %s18 = smul.u32 2, %s17
      %20 = vsyncadd [#allocation5], 0
      %s21 = smul.addr %s18, 8
      %s22 = scalar_lea.hbm %s0, %s21
      %s23 = sshll.u32 %s22, 4
      %s24 = int_to_ptr.hbm [resolvable:$true] %s23
      %s25 = sshll.u32 [#allocation4], 4
      %s26 = int_to_ptr.vmem [resolvable:$true] %s25
      %31 = dma.hbm_to_vmem [thread:$0]  %s24, 256, %s26, [#allocation5], 128, 128, 8
    $region5: #{tpu_custom_call.1} parent=1 // pred_fallthru
      _
    // Predicated region
    $region6: #{tpu_custom_call.1} parent=1 // pred_check
      _
    $region7: #{tpu_custom_call.1} parent=1 // pred_check_branch
      %33 = sbr.rel (0) target = $region9
    $region8: #{tpu_custom_call.1} parent=1 // pred_region
      %s34 = sadd.s32 0, 0
      %p35 = scmp.lt.s32.totalorder %s34, 0
      %s36 = scalar_select %p35, %s34, 0
      %s37 = smul.u32 2, %s36
      %39 = vsyncadd [#allocation8], 0
      %s40 = smul.addr %s37, 8
      %s41 = scalar_lea.hbm %s1, %s40
      %s42 = sshll.u32 %s41, 4
      %s43 = int_to_ptr.hbm [resolvable:$true] %s42
      %s44 = sshll.u32 [#allocation7], 4
      %s45 = int_to_ptr.vmem [resolvable:$true] %s44
      %50 = dma.hbm_to_vmem [thread:$0]  %s43, 256, %s45, [#allocation8], 128, 128, 8
    $region9: #{tpu_custom_call.1} parent=1 // pred_fallthru
      _
    // Predicated region
    $region10: #{tpu_custom_call.1} parent=1 // pred_check
      _
    $region11: #{tpu_custom_call.1} parent=1 // pred_check_branch
      %52 = sbr.rel (0) target = $region13
    $region12: #{tpu_custom_call.1} parent=1 // pred_region
      %s53 = sadd.s32 0, 0
      %p54 = scmp.lt.s32.totalorder %s53, 0
      %s55 = scalar_select %p54, %s53, 0
      %s56 = smul.u32 2, %s55
      %58 = vsyncadd [#allocation8], 0
      %s59 = smul.addr %s56, 8
      %s60 = scalar_lea.hbm %s2, %s59
      %s61 = sshll.u32 %s60, 4
      %s62 = int_to_ptr.hbm [resolvable:$true] %s61
      %s63 = sshll.u32 [#allocation9], 4
      %s64 = int_to_ptr.vmem [resolvable:$true] %s63
      %69 = dma.hbm_to_vmem [thread:$0]  %s62, 256, %s64, [#allocation8], 128, 128, 8
    $region13: #{tpu_custom_call.1} parent=1 // pred_fallthru
      _
    // Predicated region
    $region14: #{tpu_custom_call.1} parent=1 // pred_check
      _
    $region15: #{tpu_custom_call.1} parent=1 // pred_check_branch
      %71 = sbr.rel (0) target = $region17
    $region16: #{tpu_custom_call.1} parent=1 // pred_region
      %s72 = sadd.s32 0, 0
      %p73 = scmp.lt.s32.totalorder %s72, 0
      %s74 = scalar_select %p73, %s72, 0
      %s75 = smul.u32 2, %s74
      %77 = vsyncadd [#allocation11], 0
      %s78 = smul.addr %s75, 8
      %s79 = scalar_lea.hbm %s3, %s78
      %s80 = sshll.u32 %s79, 4
      %s81 = int_to_ptr.hbm [resolvable:$true] %s80
      %s82 = sshll.u32 [#allocation10], 4
      %s83 = int_to_ptr.vmem [resolvable:$true] %s82
      %88 = dma.hbm_to_vmem [thread:$0]  %s81, 256, %s83, [#allocation11], 128, 128, 8
    $region17: #{tpu_custom_call.1} parent=1 // pred_fallthru
      _
    // Predicated region
    $region18: #{tpu_custom_call.1} parent=1 // pred_check
      _
    $region19: #{tpu_custom_call.1} parent=1 // pred_check_branch
      %90 = sbr.rel (0) target = $region21
    $region20: #{tpu_custom_call.1} parent=1 // pred_region
      %92 = dma.done [#allocation5], 256
    $region21: #{tpu_custom_call.1} parent=1 // pred_fallthru
      _
    // Predicated region
    $region22: #{tpu_custom_call.1} parent=1 // pred_check
      _
    $region23: #{tpu_custom_call.1} parent=1 // pred_check_branch
      %94 = sbr.rel (0) target = $region25
    $region24: #{tpu_custom_call.1} parent=1 // pred_region
      %96 = dma.done [#allocation8], 256
    $region25: #{tpu_custom_call.1} parent=1 // pred_fallthru
      _
    // Predicated region
    $region26: #{tpu_custom_call.1} parent=1 // pred_check
      _
    $region27: #{tpu_custom_call.1} parent=1 // pred_check_branch
      %98 = sbr.rel (0) target = $region29
    $region28: #{tpu_custom_call.1} parent=1 // pred_region
      %100 = dma.done [#allocation8], 256
    $region29: #{tpu_custom_call.1} parent=1 // pred_fallthru
      _
    // Predicated region
    $region30: #{tpu_custom_call.1} parent=1 // pred_check
      _
    $region31: #{tpu_custom_call.1} parent=1 // pred_check_branch
      %102 = sbr.rel (0) target = $region33
    $region32: #{tpu_custom_call.1} parent=1 // pred_region
      %104 = dma.done [#allocation11], 256
    $region33: #{tpu_custom_call.1} parent=1 // pred_fallthru
      _
    %s105 = sadd.s32 0, 0
    %p106 = scmp.lt.s32.totalorder %s105, 0
    %s107 = scalar_select %p106, %s105, 0
    %s108 = smul.u32 2, %s107
    %s109 = sadd.s32 0, 0
    %p110 = scmp.lt.s32.totalorder %s109, 0
    %s111 = scalar_select %p110, %s109, 0
    %s112 = smul.u32 2, %s111
    %s113 = sadd.s32 0, 0
    %p114 = scmp.lt.s32.totalorder %s113, 0
    %s115 = scalar_select %p114, %s113, 0
    %s116 = smul.u32 2, %s115
    %s117 = sadd.s32 0, 0
    %p118 = scmp.lt.s32.totalorder %s117, 0
    %s119 = scalar_select %p118, %s117, 0
    %s120 = smul.u32 2, %s119
    %p121 = scmp.eq.s32.totalorder 0, 0
    // Predicated region
    $region34: #{tpu_custom_call.1} parent=1 // pred_check
      %p122 = pneg %p121
    $region35: #{tpu_custom_call.1} parent=1 // pred_check_branch
      %124 = sbr.rel (%p122) target = $region37
    $region36: #{tpu_custom_call.1} parent=1 // pred_region
      %125 = vst [vmem:[#allocation2] sm:$0xff] 0.0
      %126 = vst [vmem:[#allocation3] sm:$0xff] 0.0
    $region37: #{tpu_custom_call.1} parent=1 // pred_fallthru
      _
    %v127 = vld [vmem:[#allocation4] sm:$0xff]
    %v128 = vld [vmem:[#allocation4 + $0x8] sm:$0xff]
    %v129 = vld [vmem:[#allocation7] sm:$0xff]
    %v130 = vld [vmem:[#allocation7 + $0x8] sm:$0xff]
    %v131 = vsub.f32 %v127, %v129
    %v132 = vsub.f32 %v128, %v130
    %v133 = vand.u32 2147483647, %v131
    %v134 = vand.u32 2147483647, %v132
    %v135 = vld [vmem:[#allocation2] sm:$0xff]
    %v136 = vadd.f32 %v133, %v134
    %v137 = vadd.f32 %v135, %v136
    %138 = vst [vmem:[#allocation2] sm:$0xff] %v137
    %v139 = vld [vmem:[#allocation9] sm:$0xff]
    %v140 = vld [vmem:[#allocation9 + $0x8] sm:$0xff]
    %v141 = vld [vmem:[#allocation10] sm:$0xff]
    %v142 = vld [vmem:[#allocation10 + $0x8] sm:$0xff]
    %v143 = vsub.f32 %v139, %v141
    %v144 = vsub.f32 %v140, %v142
    %v145 = vmul.f32 %v143, %v143
    %v146 = vmul.f32 %v144, %v144
    %v147 = vld [vmem:[#allocation3] sm:$0xff]
    %v148 = vadd.f32 %v145, %v146
    %v149 = vadd.f32 %v147, %v148
    %150 = vst [vmem:[#allocation3] sm:$0xff] %v149
    // Predicated region
    $region38: #{tpu_custom_call.1} parent=1 // pred_check
      %p151 = pneg %p121
    $region39: #{tpu_custom_call.1} parent=1 // pred_check_branch
      %153 = sbr.rel (%p151) target = $region41
    $region40: #{tpu_custom_call.1} parent=1 // pred_region
      %v154 = vlaneseq
      %v155 = vand.u32 %v154, 127
      %v156 = vld [vmem:[#allocation2] sm:$0xff]
      %157 = vadd.xlane.f32.xlu0 %v156
      %v158 = vpop.xlane.xlu0 %157
      %v159 = vrot.slane %v158, 4
      %v160 = vadd.f32 %v158, %v159
      %v161 = vrot.slane %v160, 2
      %v162 = vadd.f32 %v160, %v161
      %v163 = vrot.slane %v162, 1
      %v164 = vadd.f32 %v162, %v163
      %s165 = vtos %v164
      %vm166 = vcmp.eq.s32.totalorder %v155, 0
      %v167 = vstv %s165
      %v168 = vsel %vm166, %v167, 0.0
      %v169 = vadd.f32 %v168, 0.0
      %v170 = vld [vmem:[#allocation3] sm:$0xff]
      %171 = vadd.xlane.f32.xlu0 %v170
      %v172 = vpop.xlane.xlu0 %171
      %v173 = vrot.slane %v172, 4
      %v174 = vadd.f32 %v172, %v173
      %v175 = vrot.slane %v174, 2
      %v176 = vadd.f32 %v174, %v175
      %v177 = vrot.slane %v176, 1
      %v178 = vadd.f32 %v176, %v177
      %s179 = vtos %v178
      %vm180 = vcmp.eq.s32.totalorder %v155, 1
      %v181 = vstv %s179
      %v182 = vsel %vm180, %v181, 0.0
      %v183 = vadd.f32 %v169, %v182
      %184 = vst [vmem:[#allocation12] sm:$0x1] %v183
    $region41: #{tpu_custom_call.1} parent=1 // pred_fallthru
      _
    // Predicated region
    $region42: #{tpu_custom_call.1} parent=1 // pred_check
      _
    $region43: #{tpu_custom_call.1} parent=1 // pred_check_branch
      %186 = sbr.rel (0) target = $region45
    $region44: #{tpu_custom_call.1} parent=1 // pred_region
      %188 = vsyncadd [#allocation6], 0
      %s190 = sshll.u32 [#allocation12], 4
      %s191 = int_to_ptr.vmem [resolvable:$true] %s190
      %s192 = sshll.u32 %s4, 4
      %s193 = int_to_ptr.hbm [resolvable:$true] %s192
      %195 = dma.vmem_to_hbm [thread:$0]  %s191, 16, %s193, [#allocation6]
    $region45: #{tpu_custom_call.1} parent=1 // pred_fallthru
      _
    // Predicated region
    $region46: #{tpu_custom_call.1} parent=1 // pred_check
      _
    $region47: #{tpu_custom_call.1} parent=1 // pred_check_branch
      %197 = sbr.rel (0) target = $region49
    $region48: #{tpu_custom_call.1} parent=1 // pred_region
      %199 = dma.done [#allocation6], 16
    $region49: #{tpu_custom_call.1} parent=1 // pred_fallthru
      _
    %200 = vsyncpa [#allocation5], 1
    %201 = vsyncpa [#allocation8], 1
    %202 = vsyncpa [#allocation11], 1
    %203 = vsyncpa [#allocation6], 1

</llo_original>
